<compile_context>
chip_gen: v5e
topology: v5e:2x2
jax: 0.10.0
libtpu: 0.0.40
codegen_flags: <defaults>
</compile_context>

<pallas_src>
import functools

import jax
import jax.numpy as jnp
from jax.experimental import pallas as pl
from jax.experimental.pallas import tpu as pltpu

_LANE = 128
_SUBLANE = 8
_MAX_HW_TILE = 8192            # lane-width cap: diminishing roofline returns past this
_TARGET_STEP_BYTES = 4 << 20   # aim to move >= ~4 MiB of x+y per grid step


def _round_up(x, m):
    return (x + m - 1) // m * m


def _vmem_budget_bytes():
    """Usable VMEM budget for this kernel's buffers (generation-aware)."""
    try:
        cap = pltpu.get_tpu_info().vmem_capacity_bytes
    except Exception:
        cap = 64 * 1024 * 1024    # conservative: v7x has the smallest VMEM per TC
    return int(cap * 0.7)         # headroom for compiler scratch / metadata


def _choose_hw_tiling(hw, cap_cols, min_splits):
    """Pick (hw_tile, num_tiles, hw_padded). Full-extent (no padding) if one tile."""
    hw128 = _round_up(hw, _LANE)
    num = max(pl.cdiv(hw128, cap_cols), min_splits)
    num = min(num, max(1, hw128 // _LANE))
    if num <= 1:
        return hw, 1, hw                       # single full-extent tile, zero padding
    hw_tile = _round_up(pl.cdiv(hw128, num), _LANE)
    num = pl.cdiv(hw128, hw_tile)              # re-balance after 128-rounding
    if num <= 1:
        return hw, 1, hw
    return hw_tile, num, num * hw_tile


def _conv1x1_bn_relu_kernel(w_ref, bias_ref, x_ref, o_ref, *, bt, precision):
    """One grid step: o[i] = relu(W_folded @ x[i] + bias) for i in [0, bt)."""
    w = w_ref[...]                 # (c_out_p, c_in_p), resident
    b = bias_ref[...]              # (c_out_p, 1) f32, broadcasts over lanes
    for i in range(bt):            # bt is a small static constant -> unrolled
        y = jnp.dot(w, x_ref[i], preferred_element_type=jnp.float32,
                    precision=precision)
        o_ref[i] = jnp.maximum(y + b, 0.0).astype(o_ref.dtype)


def conv1x1_bn_relu(x, weight, gamma, beta, running_mean, running_var,
                    *, stride=1, eps=1e-5, out_dtype=None,
                    precision=jax.lax.Precision.HIGHEST):
    """Fused 1x1 conv (no bias) + inference BatchNorm2d + ReLU.

    x: (n, c_in, h, w) f32 or bf16; weight: (c_out, c_in); BN params: (c_out,).
    `precision` controls the MXU matmul; HIGHEST keeps f32-faithful results
    (PyTorch parity), pass DEFAULT / feed bf16 x for maximum throughput.
    """
    n, c_in, h, w = x.shape
    c_out = weight.shape[0]
    out_dtype = x.dtype if out_dtype is None else out_dtype

    if stride != 1:
        # TODO(synk): fold the stride-s subsampling into the kernel's DMA
        # (4-D BlockSpec / pl.ds(..., stride=s)) instead of this extra HBM pass;
        # only worthwhile if strided 1x1 convs are hot in the workload.
        x = x[:, :, ::stride, ::stride]
        h, w = x.shape[2], x.shape[3]
    hw = h * w

    f32 = jnp.float32
    # Fold BatchNorm (inference) into the weight and a per-channel bias:
    #   bn(conv(x)) = scale*(W@x) + (beta - mean*scale) = (scale*W)@x + bias
    scale = gamma.astype(f32) * jax.lax.rsqrt(running_var.astype(f32) + eps)
    bias = beta.astype(f32) - running_mean.astype(f32) * scale
    w_folded = (weight.astype(f32) * scale[:, None]).astype(x.dtype)

    # ---- alignment ----
    c_in_p = _round_up(c_in, _SUBLANE)
    c_out_p = _round_up(c_out, _SUBLANE)
    in_sz = jnp.dtype(x.dtype).itemsize
    out_sz = jnp.dtype(out_dtype).itemsize

    # ---- VMEM-budget-aware hw tiling ----
    budget = _vmem_budget_bytes()
    fixed = (c_out_p * _round_up(c_in_p, _LANE) * in_sz       # resident weight
             + c_out_p * _LANE * 4                            # bias (lane-padded)
             + (1 << 20))                                     # compiler slack
    col_bytes = c_in_p * in_sz + c_out_p * out_sz             # x + y bytes per lane col
    cap_cols = max(_LANE, min(_MAX_HW_TILE,
                              (max(0, budget - fixed) // (2 * col_bytes))
                              // _LANE * _LANE))
    # Split the hw axis for the two v7x TensorCores only when it costs no padding.
    min_splits = 2 if (n == 1 and hw % (2 * _LANE) == 0) else 1
    hw_tile, num_hw_tiles, hw_p = _choose_hw_tiling(hw, cap_cols, min_splits)

    # ---- batch tiling: amortize per-step overhead on small-hw shapes ----
    hw_tile128 = _round_up(hw_tile, _LANE)
    bt_max = min(n, 8,
                 max(1, cap_cols // hw_tile128),
                 max(1, (_TARGET_STEP_BYTES // col_bytes) // hw_tile128))
    if num_hw_tiles == 1 and n >= 2:
        bt_max = min(bt_max, n // 2)            # keep >= 2 grid steps (megacore/v7x)
    bt = max(d for d in range(1, max(1, bt_max) + 1) if n % d == 0)

    # ---- pad only when required (identity in the aligned common case) ----
    x_flat = x.reshape(n, c_in, hw)
    if c_in_p != c_in or hw_p != hw:
        x_flat = jnp.pad(x_flat, ((0, 0), (0, c_in_p - c_in), (0, hw_p - hw)))
    if c_out_p != c_out or c_in_p != c_in:
        w_folded = jnp.pad(w_folded, ((0, c_out_p - c_out), (0, c_in_p - c_in)))
    bias_col = bias.reshape(c_out, 1)
    if c_out_p != c_out:
        bias_col = jnp.pad(bias_col, ((0, c_out_p - c_out), (0, 0)))

    grid = (n // bt, num_hw_tiles)
    kernel = functools.partial(_conv1x1_bn_relu_kernel, bt=bt, precision=precision)

    def build_call(const_pipeline_mode):
        extra = ({} if const_pipeline_mode is None
                 else {"pipeline_mode": const_pipeline_mode})
        return pl.pallas_call(
            kernel,
            out_shape=jax.ShapeDtypeStruct((n, c_out_p, hw_p), out_dtype),
            grid=grid,
            in_specs=[
                pl.BlockSpec((c_out_p, c_in_p), lambda b, t: (0, 0), **extra),
                pl.BlockSpec((c_out_p, 1), lambda b, t: (0, 0), **extra),
                pl.BlockSpec((bt, c_in_p, hw_tile), lambda b, t: (b, 0, t)),
            ],
            out_specs=pl.BlockSpec((bt, c_out_p, hw_tile), lambda b, t: (b, 0, t)),
            compiler_params=pltpu.CompilerParams(
                dimension_semantics=("parallel", "parallel"),
                vmem_limit_bytes=int(budget)),
        )

    try:
        # Resident operands (constant index_map) only need one VMEM buffer.
        out_flat = build_call(pl.Buffered(1))(w_folded, bias_col, x_flat)
    except Exception:
        out_flat = build_call(None)(w_folded, bias_col, x_flat)

    if c_out_p != c_out or hw_p != hw:
        out_flat = out_flat[:, :c_out, :hw]
    return out_flat.reshape(n, c_out, h, w)


def conv1x1_bn_relu_ref(x, weight, gamma, beta, running_mean, running_var,
                        *, stride=1, eps=1e-5):
    """Pure-JAX reference matching Conv1x1.forward (eval-mode BN)."""
    if stride != 1:
        x = x[:, :, ::stride, ::stride]
    y = jnp.einsum("oi,nihw->nohw", weight.astype(jnp.float32),
                   x.astype(jnp.float32), precision="highest")
    inv = jax.lax.rsqrt(running_var + eps)
    y = (y - running_mean[None, :, None, None]) * (gamma * inv)[None, :, None, None] \
        + beta[None, :, None, None]
    return jnp.maximum(y, 0.0)


if __name__ == "__main__":
    key = jax.random.PRNGKey(0)
    ks = jax.random.split(key, 6)

    def make_inputs(n, c_in, c_out, h, w):
        x = jax.random.normal(ks[0], (n, c_in, h, w), dtype=jnp.float32)
        weight = 0.1 * jax.random.normal(ks[1], (c_out, c_in), dtype=jnp.float32)
        gamma = jax.random.uniform(ks[2], (c_out,), minval=0.5, maxval=1.5,
                                   dtype=jnp.float32)
        beta = 0.1 * jax.random.normal(ks[3], (c_out,), dtype=jnp.float32)
        mean = 0.1 * jax.random.normal(ks[4], (c_out,), dtype=jnp.float32)
        var = jax.random.uniform(ks[5], (c_out,), minval=0.5, maxval=1.5,
                                 dtype=jnp.float32)
        return x, weight, gamma, beta, mean, var

    # Case 1: spec-sized example (exercises the channel-padding path).
    args = make_inputs(2, 4, 8, 16, 16)
    out = conv1x1_bn_relu(*args)
    jax.block_until_ready(out)
    ref = conv1x1_bn_relu_ref(*args)
    assert out.shape == (2, 8, 16, 16)
    assert jnp.allclose(out, ref, atol=1e-5, rtol=1e-5), "case1 mismatch vs reference"

    # Case 2: aligned channels + ragged hw -> zero-pad path + batch tiling.
    args = make_inputs(8, 16, 24, 10, 10)
    out = conv1x1_bn_relu(*args)
    jax.block_until_ready(out)
    ref = conv1x1_bn_relu_ref(*args)
    assert out.shape == (8, 24, 10, 10)
    assert jnp.allclose(out, ref, atol=1e-5, rtol=1e-5), "case2 mismatch vs reference"

    # Case 3: strided 1x1 conv (ResNet downsample shortcut).
    args = make_inputs(2, 4, 8, 16, 16)
    out = conv1x1_bn_relu(*args, stride=2)
    jax.block_until_ready(out)
    ref = conv1x1_bn_relu_ref(*args, stride=2)
    assert out.shape == (2, 8, 8, 8)
    assert jnp.allclose(out, ref, atol=1e-5, rtol=1e-5), "case3 mismatch vs reference"

    print("KERNEL_OK")
</pallas_src>

<mosaic_0001>
module attributes {stable_mosaic.version = 11 : i64} {
  func.func @_conv1x1_bn_relu_kernel(%arg0: i32, %arg1: i32, %arg2: memref<8x8xf32, #tpu.memory_space<vmem>>, %arg3: memref<8x1xf32, #tpu.memory_space<vmem>>, %arg4: memref<1x8x256xf32, #tpu.memory_space<vmem>>, %arg5: memref<1x8x256xf32, #tpu.memory_space<vmem>>) attributes {dimension_semantics = [#tpu.dimension_semantics<parallel>, #tpu.dimension_semantics<parallel>], iteration_bounds = array<i64: 2, 1>, scalar_prefetch = 0 : i64, scratch_operands = 0 : i64, tpu.core_type = #tpu.core_type<tc>, window_params = [{pipeline_mode = #tpu.pipeline_mode<synchronous>, transform_indices = @transform_0, window_bounds = array<i64: 8, 8>}, {pipeline_mode = #tpu.pipeline_mode<synchronous>, transform_indices = @transform_1, window_bounds = array<i64: 8, 1>}, {transform_indices = @transform_2, window_bounds = array<i64: 1, 8, 256>}, {transform_indices = @transform_3, window_bounds = array<i64: 1, 8, 256>}]} {
    %c0 = arith.constant 0 : index
    %c0_0 = arith.constant 0 : index
    %0 = vector.load %arg2[%c0, %c0_0] : memref<8x8xf32, #tpu.memory_space<vmem>>, vector<8x8xf32>
    %c0_1 = arith.constant 0 : index
    %c0_2 = arith.constant 0 : index
    %1 = vector.load %arg3[%c0_1, %c0_2] : memref<8x1xf32, #tpu.memory_space<vmem>>, vector<8x1xf32>
    %c0_3 = arith.constant 0 : index
    %c0_4 = arith.constant 0 : index
    %c0_5 = arith.constant 0 : index
    %2 = vector.load %arg4[%c0_3, %c0_4, %c0_5] : memref<1x8x256xf32, #tpu.memory_space<vmem>>, vector<1x8x256xf32>
    %3 = vector.shape_cast %2 : vector<1x8x256xf32> to vector<8x256xf32>
    %cst = arith.constant dense<0.000000e+00> : vector<8x256xf32>
    %4 = tpu.matmul %0, %3, %cst {dimension_numbers = #tpu.dot_dimension_numbers<[1], [0], [0], [1], [0, 0, 1, 1], [], []>, precision = #tpu.contract_precision<fp32>} : vector<8x8xf32>, vector<8x256xf32>, vector<8x256xf32> -> vector<8x256xf32>
    %5 = vector.broadcast %1 : vector<8x1xf32> to vector<8x256xf32>
    %6 = arith.addf %4, %5 : vector<8x256xf32>
    %cst_6 = arith.constant 0.000000e+00 : f32
    %7 = vector.broadcast %cst_6 : f32 to vector<8x256xf32>
    %8 = arith.maximumf %6, %7 : vector<8x256xf32>
    %c0_7 = arith.constant 0 : index
    %c0_8 = arith.constant 0 : index
    %c0_9 = arith.constant 0 : index
    %9 = vector.load %arg5[%c0_7, %c0_8, %c0_9] : memref<1x8x256xf32, #tpu.memory_space<vmem>>, vector<1x8x256xf32>
    %10 = vector.shape_cast %9 : vector<1x8x256xf32> to vector<8x256xf32>
    %11 = vector.shape_cast %8 : vector<8x256xf32> to vector<1x8x256xf32>
    tpu.vector_store %arg5[%c0_7, %c0_8, %c0_9], %11 {strides = array<i32>} : memref<1x8x256xf32, #tpu.memory_space<vmem>>, vector<1x8x256xf32>,
    return
  }
  func.func @transform_0(%arg0: i32, %arg1: i32) -> (i32, i32) {
    %c0_i32 = arith.constant 0 : i32
    %c0_i32_0 = arith.constant 0 : i32
    %c0_i32_1 = arith.constant 0 : i32
    return %c0_i32, %c0_i32_0 : i32, i32
  }
  func.func @transform_1(%arg0: i32, %arg1: i32) -> (i32, i32) {
    %c0_i32 = arith.constant 0 : i32
    %c0_i32_0 = arith.constant 0 : i32
    %c0_i32_1 = arith.constant 0 : i32
    return %c0_i32, %c0_i32_0 : i32, i32
  }
  func.func @transform_2(%arg0: i32, %arg1: i32) -> (i32, i32, i32) {
    %c0_i32 = arith.constant 0 : i32
    %c0_i32_0 = arith.constant 0 : i32
    return %arg0, %c0_i32, %arg1 : i32, i32, i32
  }
  func.func @transform_3(%arg0: i32, %arg1: i32) -> (i32, i32, i32) {
    %c0_i32 = arith.constant 0 : i32
    %c0_i32_0 = arith.constant 0 : i32
    return %arg0, %c0_i32, %arg1 : i32, i32, i32
  }
}

module attributes {stable_mosaic.version = 11 : i64} {
  func.func @_conv1x1_bn_relu_kernel(%arg0: i32, %arg1: i32, %arg2: memref<8x8xf32, #tpu.memory_space<vmem>>, %arg3: memref<8x1xf32, #tpu.memory_space<vmem>>, %arg4: memref<1x8x256xf32, #tpu.memory_space<vmem>>, %arg5: memref<1x8x256xf32, #tpu.memory_space<vmem>>) attributes {dimension_semantics = [#tpu.dimension_semantics<parallel>, #tpu.dimension_semantics<parallel>], iteration_bounds = array<i64: 2, 1>, scalar_prefetch = 0 : i64, scratch_operands = 0 : i64, tpu.core_type = #tpu.core_type<tc>, window_params = [{pipeline_mode = #tpu.pipeline_mode<synchronous>, transform_indices = @transform_0, window_bounds = array<i64: 8, 8>}, {pipeline_mode = #tpu.pipeline_mode<synchronous>, transform_indices = @transform_1, window_bounds = array<i64: 8, 1>}, {transform_indices = @transform_2, window_bounds = array<i64: 1, 8, 256>}, {transform_indices = @transform_3, window_bounds = array<i64: 1, 8, 256>}]} {
    %c0 = arith.constant 0 : index
    %c0_0 = arith.constant 0 : index
    %0 = vector.load %arg2[%c0, %c0_0] : memref<8x8xf32, #tpu.memory_space<vmem>>, vector<8x8xf32>
    %c0_1 = arith.constant 0 : index
    %c0_2 = arith.constant 0 : index
    %1 = vector.load %arg3[%c0_1, %c0_2] : memref<8x1xf32, #tpu.memory_space<vmem>>, vector<8x1xf32>
    %c0_3 = arith.constant 0 : index
    %c0_4 = arith.constant 0 : index
    %c0_5 = arith.constant 0 : index
    %2 = vector.load %arg4[%c0_3, %c0_4, %c0_5] : memref<1x8x256xf32, #tpu.memory_space<vmem>>, vector<1x8x256xf32>
    %3 = vector.shape_cast %2 : vector<1x8x256xf32> to vector<8x256xf32>
    %cst = arith.constant dense<0.000000e+00> : vector<8x256xf32>
    %4 = tpu.matmul %0, %3, %cst {dimension_numbers = #tpu.dot_dimension_numbers<[1], [0], [0], [1], [0, 0, 1, 1], [], []>, precision = #tpu.contract_precision<fp32>} : vector<8x8xf32>, vector<8x256xf32>, vector<8x256xf32> -> vector<8x256xf32>
    %5 = vector.broadcast %1 : vector<8x1xf32> to vector<8x256xf32>
    %6 = arith.addf %4, %5 : vector<8x256xf32>
    %cst_6 = arith.constant 0.000000e+00 : f32
    %7 = vector.broadcast %cst_6 : f32 to vector<8x256xf32>
    %8 = arith.maximumf %6, %7 : vector<8x256xf32>
    %c0_7 = arith.constant 0 : index
    %c0_8 = arith.constant 0 : index
    %c0_9 = arith.constant 0 : index
    %9 = vector.load %arg5[%c0_7, %c0_8, %c0_9] : memref<1x8x256xf32, #tpu.memory_space<vmem>>, vector<1x8x256xf32>
    %10 = vector.shape_cast %9 : vector<1x8x256xf32> to vector<8x256xf32>
    %11 = vector.shape_cast %8 : vector<8x256xf32> to vector<1x8x256xf32>
    tpu.vector_store %arg5[%c0_7, %c0_8, %c0_9], %11 {strides = array<i32>} : memref<1x8x256xf32, #tpu.memory_space<vmem>>, vector<1x8x256xf32>,
    return
  }
  func.func @transform_0(%arg0: i32, %arg1: i32) -> (i32, i32) {
    %c0_i32 = arith.constant 0 : i32
    %c0_i32_0 = arith.constant 0 : i32
    %c0_i32_1 = arith.constant 0 : i32
    return %c0_i32, %c0_i32_0 : i32, i32
  }
  func.func @transform_1(%arg0: i32, %arg1: i32) -> (i32, i32) {
    %c0_i32 = arith.constant 0 : i32
    %c0_i32_0 = arith.constant 0 : i32
    %c0_i32_1 = arith.constant 0 : i32
    return %c0_i32, %c0_i32_0 : i32, i32
  }
  func.func @transform_2(%arg0: i32, %arg1: i32) -> (i32, i32, i32) {
    %c0_i32 = arith.constant 0 : i32
    %c0_i32_0 = arith.constant 0 : i32
    return %arg0, %c0_i32, %arg1 : i32, i32, i32
  }
  func.func @transform_3(%arg0: i32, %arg1: i32) -> (i32, i32, i32) {
    %c0_i32 = arith.constant 0 : i32
    %c0_i32_0 = arith.constant 0 : i32
    return %arg0, %c0_i32, %arg1 : i32, i32, i32
  }
}

</mosaic_0001>

<llo_original>
// kernel: tpu_custom_call.1
$region0: #{tpu_custom_call.1}
  #allocation0 [shape = 'u32[]', space=smem, size = 0x4, offset = 0x4, fixed_abs, tag = 'smem constant byte address 0x4 - core index']
  #allocation1 [shape = 'u32[72,128]{1,0:T(1,128)}', space=vmem, size = 0x9000, scoped, tag = 'internal scratch']
  %s0 = inlined_call_operand.vmem [shape: f32[8,8], index: 0, kind: input, shape index: {}]
  %s1 = inlined_call_operand.vmem [shape: f32[8,1], index: 1, kind: input, shape index: {}]
  %s2 = inlined_call_operand.hbm [shape: f32[2,8,256], index: 2, kind: input, shape index: {}]
  %s3 = inlined_call_operand.hbm [shape: f32[2,8,256], index: 3, kind: output, shape index: {}]
  %s4 = sld [smem:[#allocation0]]
  $region49: #{tpu_custom_call.1} parent=0
    _
  %s6 = ssub.s32 1, %s4
  %s7 = scalar_select 0, %s6, %s4
  $region1: #{tpu_custom_call.1} parent=0
    #allocation2 [shape = 'u8[16384]{0}', space=vmem, size = 0x4000, scoped, tag = 'input window, operand 2']
    #allocation3 [shape = 's32[2]{0}', space=sflag, size = 0x8, scoped, tag = 'scoped memory for tpu_custom_call.1']
    #allocation4 [shape = 's32[2]{0}', space=sflag, size = 0x8, scoped, tag = 'scoped memory for tpu_custom_call.1']
    #allocation5 [shape = 'u8[16384]{0}', space=vmem, size = 0x4000, scoped, tag = 'output window, operand 0']
    %8 = vsyncpa [#allocation3], 0
    %s9 = scalar_lea.sflag [#allocation3], 1
    %10 = vsyncpa %s9, 0
    %11 = vsyncpa [#allocation4], 0
    %s12 = scalar_lea.sflag [#allocation4], 1
    %13 = vsyncpa %s12, 0
    loop: start=0, step=1, limit=4
    $region2: #{tpu_custom_call.1} parent=1 // loop_pre_header
      _
    $region3: #{tpu_custom_call.1} parent=1 // loop_header
      %s15 = sphi 0, %s19
      %p16 = scmp.ge.s32.totalorder %s15, 4
      %s22 = sphi 0, %s34
      %s23 = sphi 0, %s30
      %s24 = sphi 0, %s22
      %s25 = sphi 0, %s23
      %s26 = sphi 0, %s24
      %s27 = sphi 0, %s25
      %s35 = sphi 0, %s35
      %s37 = sphi 0, %s35
      %s38 = sphi 0, %s37
      %s52 = sphi 0, %s38
      %s56 = sphi 0, %s56
      %s58 = sphi 0, %s56
      %s59 = sphi 0, %s58
      %s73 = sphi 0, %s59
      %s81 = sphi 0, %s83
      %s84 = sphi 0, %s81
      %s85 = sphi 0, %s84
      %s101 = sphi 0, %s85
      %s109 = sphi 0, %s111
      %s112 = sphi 0, %s109
      %s113 = sphi 0, %s112
      %s129 = sphi 0, %s113
    $region4: #{tpu_custom_call.1} parent=1 // loop_header_branch
      %18 = sbr.rel (%p16) target = $region8
    $region5: #{tpu_custom_call.1} parent=1 // loop_body
      %s20 = ssub.s32 %s15, 1
      %s21 = ssub.s32 %s15, 2
      %s28 = sadd.s32 1, %s23
      %p29 = scmp.ge.s32.totalorder %s28, 1
      %s30 = scalar_select %p29, 0, %s28
      %s31 = sadd.s32 1, %s22
      %s32 = scalar_select %p29, %s31, %s22
      %p33 = scmp.ge.s32.totalorder %s32, 2
      %s34 = scalar_select %p33, 0, %s32
      %s36 = sadd.s32 %s35, 1
      %p39 = scmp.eq.s32.totalorder %s15, 1
      %p40 = scmp.ne.s32.totalorder %s35, %s37
      %p41 = scmp.eq.s32.totalorder %s15, 0
      %p42 = por %p40, %p41
      %p43 = scmp.ne.s32.totalorder %s35, %s37
      %p44 = scmp.eq.s32.totalorder %s20, 1
      %p45 = por %p43, %p44
      %p46 = scmp.ne.s32.totalorder %s37, %s38
      %p47 = scmp.eq.s32.totalorder %s20, 0
      %p48 = por %p46, %p47
      %p49 = scmp.ne.s32.totalorder %s37, %s38
      %p50 = scmp.eq.s32.totalorder %s21, 1
      %p51 = por %p49, %p50
      %p53 = scmp.ne.s32.totalorder %s38, %s52
      %p54 = scmp.eq.s32.totalorder %s21, 0
      %p55 = por %p53, %p54
      %s57 = sadd.s32 %s56, 1
      %p60 = scmp.eq.s32.totalorder %s15, 1
      %p61 = scmp.ne.s32.totalorder %s56, %s58
      %p62 = scmp.eq.s32.totalorder %s15, 0
      %p63 = por %p61, %p62
      %p64 = scmp.ne.s32.totalorder %s56, %s58
      %p65 = scmp.eq.s32.totalorder %s20, 1
      %p66 = por %p64, %p65
      %p67 = scmp.ne.s32.totalorder %s58, %s59
      %p68 = scmp.eq.s32.totalorder %s20, 0
      %p69 = por %p67, %p68
      %p70 = scmp.ne.s32.totalorder %s58, %s59
      %p71 = scmp.eq.s32.totalorder %s21, 1
      %p72 = por %p70, %p71
      %p74 = scmp.ne.s32.totalorder %s59, %s73
      %p75 = scmp.eq.s32.totalorder %s21, 0
      %p76 = por %p74, %p75
      %s77 = ssub.s32 %s22, %s34
      %s78 = ssub.s32 %s23, %s30
      %s79 = sor.u32 %s77, %s78
      %p80 = scmp.eq.s32.totalorder %s79, 0
      %s82 = sadd.s32 %s81, 1
      %s83 = scalar_select %p80, %s81, %s82
      %p86 = pneg %p80
      %p87 = scmp.eq.s32.totalorder %s15, 1
      %p88 = por %p86, %p87
      %p89 = scmp.ne.s32.totalorder %s81, %s84
      %p90 = scmp.eq.s32.totalorder %s15, 0
      %p91 = por %p89, %p90
      %p92 = scmp.ne.s32.totalorder %s81, %s84
      %p93 = scmp.eq.s32.totalorder %s20, 1
      %p94 = por %p92, %p93
      %p95 = scmp.ne.s32.totalorder %s84, %s85
      %p96 = scmp.eq.s32.totalorder %s20, 0
      %p97 = por %p95, %p96
      %p98 = scmp.ne.s32.totalorder %s84, %s85
      %p99 = scmp.eq.s32.totalorder %s21, 1
      %p100 = por %p98, %p99
      %p102 = scmp.ne.s32.totalorder %s85, %s101
      %p103 = scmp.eq.s32.totalorder %s21, 0
      %p104 = por %p102, %p103
      %s105 = ssub.s32 %s22, %s34
      %s106 = ssub.s32 %s23, %s30
      %s107 = sor.u32 %s105, %s106
      %p108 = scmp.eq.s32.totalorder %s107, 0
      %s110 = sadd.s32 %s109, 1
      %s111 = scalar_select %p108, %s109, %s110
      %p114 = pneg %p108
      %p115 = scmp.eq.s32.totalorder %s15, 1
      %p116 = por %p114, %p115
      %p117 = scmp.ne.s32.totalorder %s109, %s112
      %p118 = scmp.eq.s32.totalorder %s15, 0
      %p119 = por %p117, %p118
      %p120 = scmp.ne.s32.totalorder %s109, %s112
      %p121 = scmp.eq.s32.totalorder %s20, 1
      %p122 = por %p120, %p121
      %p123 = scmp.ne.s32.totalorder %s112, %s113
      %p124 = scmp.eq.s32.totalorder %s20, 0
      %p125 = por %p123, %p124
      %p126 = scmp.ne.s32.totalorder %s112, %s113
      %p127 = scmp.eq.s32.totalorder %s21, 1
      %p128 = por %p126, %p127
      %p130 = scmp.ne.s32.totalorder %s113, %s129
      %p131 = scmp.eq.s32.totalorder %s21, 0
      %p132 = por %p130, %p131
      %p133 = scmp.le.s32.totalorder 1, %s15
      %p134 = scmp.lt.s32.totalorder %s15, 3
      %p135 = pnand %p133, %p134
      %p136 = pneg %p135
      // Predicated region
      $region9: #{tpu_custom_call.1} parent=5 // pred_check
        _
      $region10: #{tpu_custom_call.1} parent=5 // pred_check_branch
        %138 = sbr.rel (%p135) target = $region12
      $region11: #{tpu_custom_call.1} parent=5 // pred_region
        %s139 = ssub.s32 %s15, 1
        // Predicated region
        $region13: #{tpu_custom_call.1} parent=11 // pred_check
          %p140 = pneg %p48
        $region14: #{tpu_custom_call.1} parent=11 // pred_check_branch
          %142 = sbr.rel (%p140) target = $region16
        $region15: #{tpu_custom_call.1} parent=11 // pred_region
          _
        $region16: #{tpu_custom_call.1} parent=11 // pred_fallthru
          _
        // Predicated region
        $region17: #{tpu_custom_call.1} parent=11 // pred_check
          %p143 = pneg %p69
        $region18: #{tpu_custom_call.1} parent=11 // pred_check_branch
          %145 = sbr.rel (%p143) target = $region20
        $region19: #{tpu_custom_call.1} parent=11 // pred_region
          _
        $region20: #{tpu_custom_call.1} parent=11 // pred_fallthru
          _
      $region12: #{tpu_custom_call.1} parent=5 // pred_fallthru
        _
      %p146 = scmp.lt.s32.totalorder %s15, 2
      // Predicated region
      $region21: #{tpu_custom_call.1} parent=5 // pred_check
        %p147 = pneg %p146
      $region22: #{tpu_custom_call.1} parent=5 // pred_check_branch
        %149 = sbr.rel (%p147) target = $region24
      $region23: #{tpu_custom_call.1} parent=5 // pred_region
        // Predicated region
        $region25: #{tpu_custom_call.1} parent=23 // pred_check
          %p150 = pneg %p91
        $region26: #{tpu_custom_call.1} parent=23 // pred_check_branch
          %152 = sbr.rel (%p150) target = $region28
        $region27: #{tpu_custom_call.1} parent=23 // pred_region
          %s153 = sand.u32 %s81, 1
          %s154 = scalar_lea.sflag [#allocation3], %s153
          %s155 = sand.u32 %s81, 1
          %s156 = smul.addr %s155, 16
          %s157 = scalar_lea.vmem [#allocation2], %s156
          %s158 = smul.u32 2, %s23
          %160 = vsyncadd %s154, 0
          %s161 = smul.addr %s22, 2
          %s162 = sadd.s32 %s158, %s161
          %s163 = smul.addr %s162, 8
          %s164 = scalar_lea.hbm %s2, %s163
          %s166 = sshll.u32 %s164, 4
          %s167 = int_to_ptr.hbm [resolvable:$true] %s166
          %s168 = sshll.u32 %s157, 4
          %s169 = int_to_ptr.vmem [resolvable:$true] %s168
          %171 = dma.hbm_to_vmem [thread:$0]  %s167, 256, %s169, %s154
        $region28: #{tpu_custom_call.1} parent=23 // pred_fallthru
          _
      $region24: #{tpu_custom_call.1} parent=5 // pred_fallthru
        _
      %p172 = scmp.le.s32.totalorder 1, %s15
      %p173 = scmp.lt.s32.totalorder %s15, 3
      %p174 = pnand %p172, %p173
      %p175 = pneg %p174
      // Predicated region
      $region29: #{tpu_custom_call.1} parent=5 // pred_check
        _
      $region30: #{tpu_custom_call.1} parent=5 // pred_check_branch
        %177 = sbr.rel (%p174) target = $region32
      $region31: #{tpu_custom_call.1} parent=5 // pred_region
        %s178 = ssub.s32 %s15, 1
        %s179 = sand.u32 %s84, 1
        %s180 = scalar_lea.sflag [#allocation3], %s179
        %s181 = sand.u32 %s84, 1
        %s182 = smul.addr %s181, 16
        %s183 = scalar_lea.vmem [#allocation2], %s182
        // Predicated region
        $region33: #{tpu_custom_call.1} parent=31 // pred_check
          %p184 = pneg %p97
        $region34: #{tpu_custom_call.1} parent=31 // pred_check_branch
          %186 = sbr.rel (%p184) target = $region36
        $region35: #{tpu_custom_call.1} parent=31 // pred_region
          %188 = dma.done %s180, 256
        $region36: #{tpu_custom_call.1} parent=31 // pred_fallthru
          _
        %p189 = pneg %p48
        %p190 = pneg %p45
        %p191 = pneg %p69
        %p192 = pneg %p66
        %s193 = sand.u32 %s84, 1
        %s194 = scalar_lea.sflag [#allocation3], %s193
        %s195 = sand.u32 %s84, 1
        %s196 = smul.addr %s195, 16
        %s197 = scalar_lea.vmem [#allocation2], %s196
        %p198 = pneg %p97
        %p199 = pneg %p94
        %p200 = pneg %p125
        %p201 = pneg %p122
        %s202 = sand.u32 %s112, 1
        %s203 = scalar_lea.sflag [#allocation4], %s202
        %s204 = sand.u32 %s112, 1
        %s205 = smul.addr %s204, 16
        %s206 = scalar_lea.vmem [#allocation5], %s205
        %s207 = smul.u32 2, %s25
        %s208 = smul.u32 2, %s25
        %v209 = vld [vmem:[%s0] sm:$0xff]
        %v210 = vld [vmem:[%s1] sm:$0xff]
        %v211 = vld [vmem:[%s183] sm:$0xff]
        %v212 = vld [vmem:[%s183 + $0x8] sm:$0xff]
        %214 = vset.pattern.permute.xlu0 0
        %215 = vperm.xlu0 %214, %v210
        %v216 = vpop.permute.xlu0 %215
        %vm218 = vcmask 64512
        %v220 = vsel %vm218, %v209, 0
        %222 = vmatpush.msra.mxu0 0.0
        %223 = vmatpush.msra.mxu0 0.0
        %224 = vmatpush.msra.mxu0 0.0
        %225 = vmatpush.msra.mxu0 0.0
        %226 = vmatpush.msra.mxu0 0.0
        %227 = vmatpush.msra.mxu0 0.0
        %228 = vmatpush.msra.mxu0 0.0
        %229 = vmatpush.msra.mxu0 0.0
        %230 = vmatpush.msra.mxu0 0.0
        %231 = vmatpush.msra.mxu0 0.0
        %232 = vmatpush.msra.mxu0 0.0
        %233 = vmatpush.msra.mxu0 0.0
        %234 = vmatpush.msra.mxu0 0.0
        %235 = vmatpush.msra.mxu0 0.0
        %236 = vmatpush.msra.mxu0 0.0
        %v237 = vand.u32 %v211, 4294901760
        %238 = vmatpush.msra.mxu0 %v237
        %v239 = vand.u32 %v220, 4294901760
        %v240 = vsub.f32 %v220, %v239
        %v241 = vand.u32 %v240, 4294901760
        %v242 = vsub.f32 %v240, %v241
        %v243 = vand.u32 %v242, 4294901760
        %244 = vmatmul.f32.gmra.mxu0 %v243
        %v245 = vpop.f32.mrf.mxu0
        %v246 = vadd.f32 %v216, %v245
        %247 = vdwg.mxu0
        %248 = vmatpush.msra.mxu0 0.0
        %249 = vmatpush.msra.mxu0 0.0
        %250 = vmatpush.msra.mxu0 0.0
        %251 = vmatpush.msra.mxu0 0.0
        %252 = vmatpush.msra.mxu0 0.0
        %253 = vmatpush.msra.mxu0 0.0
        %254 = vmatpush.msra.mxu0 0.0
        %255 = vmatpush.msra.mxu0 0.0
        %256 = vmatpush.msra.mxu0 0.0
        %257 = vmatpush.msra.mxu0 0.0
        %258 = vmatpush.msra.mxu0 0.0
        %259 = vmatpush.msra.mxu0 0.0
        %260 = vmatpush.msra.mxu0 0.0
        %261 = vmatpush.msra.mxu0 0.0
        %262 = vmatpush.msra.mxu0 0.0
        %v263 = vand.u32 %v211, 4294901760
        %v264 = vsub.f32 %v211, %v263
        %v265 = vand.u32 %v264, 4294901760
        %v266 = vsub.f32 %v264, %v265
        %v267 = vand.u32 %v266, 4294901760
        %268 = vmatpush.msra.mxu0 %v267
        %v269 = vand.u32 %v220, 4294901760
        %270 = vmatmul.f32.gmra.mxu0 %v269
        %v271 = vpop.f32.mrf.mxu0
        %v272 = vadd.f32 %v246, %v271
        %273 = vdwg.mxu0
        %274 = vmatpush.msra.mxu0 0.0
        %275 = vmatpush.msra.mxu0 0.0
        %276 = vmatpush.msra.mxu0 0.0
        %277 = vmatpush.msra.mxu0 0.0
        %278 = vmatpush.msra.mxu0 0.0
        %279 = vmatpush.msra.mxu0 0.0
        %280 = vmatpush.msra.mxu0 0.0
        %281 = vmatpush.msra.mxu0 0.0
        %282 = vmatpush.msra.mxu0 0.0
        %283 = vmatpush.msra.mxu0 0.0
        %284 = vmatpush.msra.mxu0 0.0
        %285 = vmatpush.msra.mxu0 0.0
        %286 = vmatpush.msra.mxu0 0.0
        %287 = vmatpush.msra.mxu0 0.0
        %288 = vmatpush.msra.mxu0 0.0
        %v289 = vand.u32 %v211, 4294901760
        %v290 = vsub.f32 %v211, %v289
        %291 = vmatpush.msra.mxu0 %v290
        %v292 = vand.u32 %v220, 4294901760
        %v293 = vsub.f32 %v220, %v292
        %294 = vmatmul.f32.gmra.mxu0 %v293
        %v295 = vpop.f32.mrf.mxu0
        %v296 = vadd.f32 %v272, %v295
        %297 = vdwg.mxu0
        %298 = vmatpush.msra.mxu0 0.0
        %299 = vmatpush.msra.mxu0 0.0
        %300 = vmatpush.msra.mxu0 0.0
        %301 = vmatpush.msra.mxu0 0.0
        %302 = vmatpush.msra.mxu0 0.0
        %303 = vmatpush.msra.mxu0 0.0
        %304 = vmatpush.msra.mxu0 0.0
        %305 = vmatpush.msra.mxu0 0.0
        %306 = vmatpush.msra.mxu0 0.0
        %307 = vmatpush.msra.mxu0 0.0
        %308 = vmatpush.msra.mxu0 0.0
        %309 = vmatpush.msra.mxu0 0.0
        %310 = vmatpush.msra.mxu0 0.0
        %311 = vmatpush.msra.mxu0 0.0
        %312 = vmatpush.msra.mxu0 0.0
        %v313 = vand.u32 %v211, 4294901760
        %314 = vmatpush.msra.mxu0 %v313
        %v315 = vand.u32 %v220, 4294901760
        %v316 = vsub.f32 %v220, %v315
        %v317 = vand.u32 %v316, 4294901760
        %318 = vmatmul.f32.gmra.mxu0 %v317
        %v319 = vpop.f32.mrf.mxu0
        %v320 = vadd.f32 %v296, %v319
        %321 = vdwg.mxu0
        %322 = vmatpush.msra.mxu0 0.0
        %323 = vmatpush.msra.mxu0 0.0
        %324 = vmatpush.msra.mxu0 0.0
        %325 = vmatpush.msra.mxu0 0.0
        %326 = vmatpush.msra.mxu0 0.0
        %327 = vmatpush.msra.mxu0 0.0
        %328 = vmatpush.msra.mxu0 0.0
        %329 = vmatpush.msra.mxu0 0.0
        %330 = vmatpush.msra.mxu0 0.0
        %331 = vmatpush.msra.mxu0 0.0
        %332 = vmatpush.msra.mxu0 0.0
        %333 = vmatpush.msra.mxu0 0.0
        %334 = vmatpush.msra.mxu0 0.0
        %335 = vmatpush.msra.mxu0 0.0
        %336 = vmatpush.msra.mxu0 0.0
        %v337 = vand.u32 %v211, 4294901760
        %v338 = vsub.f32 %v211, %v337
        %v339 = vand.u32 %v338, 4294901760
        %340 = vmatpush.msra.mxu0 %v339
        %v341 = vand.u32 %v220, 4294901760
        %342 = vmatmul.f32.gmra.mxu0 %v341
        %v343 = vpop.f32.mrf.mxu0
        %v344 = vadd.f32 %v320, %v343
        %345 = vdwg.mxu0
        %346 = vmatpush.msra.mxu0 0.0
        %347 = vmatpush.msra.mxu0 0.0
        %348 = vmatpush.msra.mxu0 0.0
        %349 = vmatpush.msra.mxu0 0.0
        %350 = vmatpush.msra.mxu0 0.0
        %351 = vmatpush.msra.mxu0 0.0
        %352 = vmatpush.msra.mxu0 0.0
        %353 = vmatpush.msra.mxu0 0.0
        %354 = vmatpush.msra.mxu0 0.0
        %355 = vmatpush.msra.mxu0 0.0
        %356 = vmatpush.msra.mxu0 0.0
        %357 = vmatpush.msra.mxu0 0.0
        %358 = vmatpush.msra.mxu0 0.0
        %359 = vmatpush.msra.mxu0 0.0
        %360 = vmatpush.msra.mxu0 0.0
        %v361 = vand.u32 %v211, 4294901760
        %362 = vmatpush.msra.mxu0 %v361
        %v363 = vand.u32 %v220, 4294901760
        %364 = vmatmul.f32.gmra.mxu0 %v363
        %v365 = vpop.f32.mrf.mxu0
        %v366 = vadd.f32 %v344, %v365
        %367 = vdwg.mxu0
        %368 = vmatpush.msra.mxu0 0.0
        %369 = vmatpush.msra.mxu0 0.0
        %370 = vmatpush.msra.mxu0 0.0
        %371 = vmatpush.msra.mxu0 0.0
        %372 = vmatpush.msra.mxu0 0.0
        %373 = vmatpush.msra.mxu0 0.0
        %374 = vmatpush.msra.mxu0 0.0
        %375 = vmatpush.msra.mxu0 0.0
        %376 = vmatpush.msra.mxu0 0.0
        %377 = vmatpush.msra.mxu0 0.0
        %378 = vmatpush.msra.mxu0 0.0
        %379 = vmatpush.msra.mxu0 0.0
        %380 = vmatpush.msra.mxu0 0.0
        %381 = vmatpush.msra.mxu0 0.0
        %382 = vmatpush.msra.mxu0 0.0
        %v383 = vand.u32 %v212, 4294901760
        %384 = vmatpush.msra.mxu0 %v383
        %v385 = vand.u32 %v220, 4294901760
        %v386 = vsub.f32 %v220, %v385
        %v387 = vand.u32 %v386, 4294901760
        %v388 = vsub.f32 %v386, %v387
        %v389 = vand.u32 %v388, 4294901760
        %390 = vmatmul.f32.gmra.mxu0 %v389
        %v391 = vpop.f32.mrf.mxu0
        %v392 = vadd.f32 %v216, %v391
        %393 = vdwg.mxu0
        %394 = vmatpush.msra.mxu0 0.0
        %395 = vmatpush.msra.mxu0 0.0
        %396 = vmatpush.msra.mxu0 0.0
        %397 = vmatpush.msra.mxu0 0.0
        %398 = vmatpush.msra.mxu0 0.0
        %399 = vmatpush.msra.mxu0 0.0
        %400 = vmatpush.msra.mxu0 0.0
        %401 = vmatpush.msra.mxu0 0.0
        %402 = vmatpush.msra.mxu0 0.0
        %403 = vmatpush.msra.mxu0 0.0
        %404 = vmatpush.msra.mxu0 0.0
        %405 = vmatpush.msra.mxu0 0.0
        %406 = vmatpush.msra.mxu0 0.0
        %407 = vmatpush.msra.mxu0 0.0
        %408 = vmatpush.msra.mxu0 0.0
        %v409 = vand.u32 %v212, 4294901760
        %v410 = vsub.f32 %v212, %v409
        %v411 = vand.u32 %v410, 4294901760
        %v412 = vsub.f32 %v410, %v411
        %v413 = vand.u32 %v412, 4294901760
        %414 = vmatpush.msra.mxu0 %v413
        %v415 = vand.u32 %v220, 4294901760
        %416 = vmatmul.f32.gmra.mxu0 %v415
        %v417 = vpop.f32.mrf.mxu0
        %v418 = vadd.f32 %v392, %v417
        %419 = vdwg.mxu0
        %420 = vmatpush.msra.mxu0 0.0
        %421 = vmatpush.msra.mxu0 0.0
        %422 = vmatpush.msra.mxu0 0.0
        %423 = vmatpush.msra.mxu0 0.0
        %424 = vmatpush.msra.mxu0 0.0
        %425 = vmatpush.msra.mxu0 0.0
        %426 = vmatpush.msra.mxu0 0.0
        %427 = vmatpush.msra.mxu0 0.0
        %428 = vmatpush.msra.mxu0 0.0
        %429 = vmatpush.msra.mxu0 0.0
        %430 = vmatpush.msra.mxu0 0.0
        %431 = vmatpush.msra.mxu0 0.0
        %432 = vmatpush.msra.mxu0 0.0
        %433 = vmatpush.msra.mxu0 0.0
        %434 = vmatpush.msra.mxu0 0.0
        %v435 = vand.u32 %v212, 4294901760
        %v436 = vsub.f32 %v212, %v435
        %437 = vmatpush.msra.mxu0 %v436
        %v438 = vand.u32 %v220, 4294901760
        %v439 = vsub.f32 %v220, %v438
        %440 = vmatmul.f32.gmra.mxu0 %v439
        %v441 = vpop.f32.mrf.mxu0
        %v442 = vadd.f32 %v418, %v441
        %443 = vdwg.mxu0
        %444 = vmatpush.msra.mxu0 0.0
        %445 = vmatpush.msra.mxu0 0.0
        %446 = vmatpush.msra.mxu0 0.0
        %447 = vmatpush.msra.mxu0 0.0
        %448 = vmatpush.msra.mxu0 0.0
        %449 = vmatpush.msra.mxu0 0.0
        %450 = vmatpush.msra.mxu0 0.0
        %451 = vmatpush.msra.mxu0 0.0
        %452 = vmatpush.msra.mxu0 0.0
        %453 = vmatpush.msra.mxu0 0.0
        %454 = vmatpush.msra.mxu0 0.0
        %455 = vmatpush.msra.mxu0 0.0
        %456 = vmatpush.msra.mxu0 0.0
        %457 = vmatpush.msra.mxu0 0.0
        %458 = vmatpush.msra.mxu0 0.0
        %v459 = vand.u32 %v212, 4294901760
        %460 = vmatpush.msra.mxu0 %v459
        %v461 = vand.u32 %v220, 4294901760
        %v462 = vsub.f32 %v220, %v461
        %v463 = vand.u32 %v462, 4294901760
        %464 = vmatmul.f32.gmra.mxu0 %v463
        %v465 = vpop.f32.mrf.mxu0
        %v466 = vadd.f32 %v442, %v465
        %467 = vdwg.mxu0
        %468 = vmatpush.msra.mxu0 0.0
        %469 = vmatpush.msra.mxu0 0.0
        %470 = vmatpush.msra.mxu0 0.0
        %471 = vmatpush.msra.mxu0 0.0
        %472 = vmatpush.msra.mxu0 0.0
        %473 = vmatpush.msra.mxu0 0.0
        %474 = vmatpush.msra.mxu0 0.0
        %475 = vmatpush.msra.mxu0 0.0
        %476 = vmatpush.msra.mxu0 0.0
        %477 = vmatpush.msra.mxu0 0.0
        %478 = vmatpush.msra.mxu0 0.0
        %479 = vmatpush.msra.mxu0 0.0
        %480 = vmatpush.msra.mxu0 0.0
        %481 = vmatpush.msra.mxu0 0.0
        %482 = vmatpush.msra.mxu0 0.0
        %v483 = vand.u32 %v212, 4294901760
        %v484 = vsub.f32 %v212, %v483
        %v485 = vand.u32 %v484, 4294901760
        %486 = vmatpush.msra.mxu0 %v485
        %v487 = vand.u32 %v220, 4294901760
        %488 = vmatmul.f32.gmra.mxu0 %v487
        %v489 = vpop.f32.mrf.mxu0
        %v490 = vadd.f32 %v466, %v489
        %491 = vdwg.mxu0
        %492 = vmatpush.msra.mxu0 0.0
        %493 = vmatpush.msra.mxu0 0.0
        %494 = vmatpush.msra.mxu0 0.0
        %495 = vmatpush.msra.mxu0 0.0
        %496 = vmatpush.msra.mxu0 0.0
        %497 = vmatpush.msra.mxu0 0.0
        %498 = vmatpush.msra.mxu0 0.0
        %499 = vmatpush.msra.mxu0 0.0
        %500 = vmatpush.msra.mxu0 0.0
        %501 = vmatpush.msra.mxu0 0.0
        %502 = vmatpush.msra.mxu0 0.0
        %503 = vmatpush.msra.mxu0 0.0
        %504 = vmatpush.msra.mxu0 0.0
        %505 = vmatpush.msra.mxu0 0.0
        %506 = vmatpush.msra.mxu0 0.0
        %v507 = vand.u32 %v212, 4294901760
        %508 = vmatpush.msra.mxu0 %v507
        %v509 = vand.u32 %v220, 4294901760
        %510 = vmatmul.f32.gmra.mxu0 %v509
        %v511 = vpop.f32.mrf.mxu0
        %v512 = vadd.f32 %v490, %v511
        %513 = vdwg.mxu0
        %v514 = vmax.f32 %v366, 0.0
        %v515 = vmax.f32 %v512, 0.0
        %516 = vst [vmem:[%s206] sm:$0xff] %v514
        %517 = vst [vmem:[%s206 + $0x8] sm:$0xff] %v515
        %s518 = sand.u32 %s112, 1
        %s519 = scalar_lea.sflag [#allocation4], %s518
        %s520 = sand.u32 %s112, 1
        %s521 = smul.addr %s520, 16
        %s522 = scalar_lea.vmem [#allocation5], %s521
        // Predicated region
        $region37: #{tpu_custom_call.1} parent=31 // pred_check
          %p523 = pneg %p122
        $region38: #{tpu_custom_call.1} parent=31 // pred_check_branch
          %525 = sbr.rel (%p523) target = $region40
        $region39: #{tpu_custom_call.1} parent=31 // pred_region
          %s526 = smul.u32 2, %s25
          %528 = vsyncadd %s519, 0
          %s529 = smul.addr %s24, 2
          %s530 = sadd.s32 %s526, %s529
          %s531 = smul.addr %s530, 8
          %s532 = scalar_lea.hbm %s3, %s531
          %s534 = sshll.u32 %s522, 4
          %s535 = int_to_ptr.vmem [resolvable:$true] %s534
          %s536 = sshll.u32 %s532, 4
          %s537 = int_to_ptr.hbm [resolvable:$true] %s536
          %539 = dma.vmem_to_hbm [thread:$0]  %s535, 256, %s537, %s519
        $region40: #{tpu_custom_call.1} parent=31 // pred_fallthru
          _
      $region32: #{tpu_custom_call.1} parent=5 // pred_fallthru
        _
      %p540 = scmp.le.s32.totalorder 2, %s15
      // Predicated region
      $region41: #{tpu_custom_call.1} parent=5 // pred_check
        %p541 = pneg %p540
      $region42: #{tpu_custom_call.1} parent=5 // pred_check_branch
        %543 = sbr.rel (%p541) target = $region44
      $region43: #{tpu_custom_call.1} parent=5 // pred_region
        %s544 = ssub.s32 %s15, 2
        // Predicated region
        $region45: #{tpu_custom_call.1} parent=43 // pred_check
          %p545 = pneg %p128
        $region46: #{tpu_custom_call.1} parent=43 // pred_check_branch
          %547 = sbr.rel (%p545) target = $region48
        $region47: #{tpu_custom_call.1} parent=43 // pred_region
          %s548 = sand.u32 %s113, 1
          %s549 = scalar_lea.sflag [#allocation4], %s548
          %s550 = sand.u32 %s113, 1
          %s551 = smul.addr %s550, 16
          %s552 = scalar_lea.vmem [#allocation5], %s551
          %554 = dma.done %s549, 256
        $region48: #{tpu_custom_call.1} parent=43 // pred_fallthru
          _
      $region44: #{tpu_custom_call.1} parent=5 // pred_fallthru
        _
    $region6: #{tpu_custom_call.1} parent=1 // loop_footer
      %s19 = sadd.s32 1, %s15
    $region7: #{tpu_custom_call.1} parent=1 // loop_footer_branch
      %14 = sbr.rel target = $region3
    $region8: #{tpu_custom_call.1} parent=1 // loop_exit
      _
    %555 = vsyncpa [#allocation3], 1
    %s556 = scalar_lea.sflag [#allocation3], 1
    %557 = vsyncpa %s556, 1
    %558 = vsyncpa [#allocation4], 1
    %s559 = scalar_lea.sflag [#allocation4], 1
    %560 = vsyncpa %s559, 1

// kernel: tpu_custom_call.1
$region0: #{tpu_custom_call.1}
  #allocation0 [shape = 'u32[]', space=smem, size = 0x4, offset = 0x4, fixed_abs, tag = 'smem constant byte address 0x4 - core index']
  #allocation1 [shape = 'u32[72,128]{1,0:T(1,128)}', space=vmem, size = 0x9000, scoped, tag = 'internal scratch']
  %s0 = inlined_call_operand.vmem [shape: f32[8,8], index: 0, kind: input, shape index: {}]
  %s1 = inlined_call_operand.vmem [shape: f32[8,1], index: 1, kind: input, shape index: {}]
  %s2 = inlined_call_operand.hbm [shape: f32[2,8,256], index: 2, kind: input, shape index: {}]
  %s3 = inlined_call_operand.hbm [shape: f32[2,8,256], index: 3, kind: output, shape index: {}]
  %s4 = sld [smem:[#allocation0]]
  $region49: #{tpu_custom_call.1} parent=0
    _
  %s6 = ssub.s32 1, %s4
  %s7 = scalar_select 0, %s6, %s4
  $region1: #{tpu_custom_call.1} parent=0
    #allocation2 [shape = 'u8[16384]{0}', space=vmem, size = 0x4000, scoped, tag = 'input window, operand 2']
    #allocation3 [shape = 's32[2]{0}', space=sflag, size = 0x8, scoped, tag = 'scoped memory for tpu_custom_call.1']
    #allocation4 [shape = 's32[2]{0}', space=sflag, size = 0x8, scoped, tag = 'scoped memory for tpu_custom_call.1']
    #allocation5 [shape = 'u8[16384]{0}', space=vmem, size = 0x4000, scoped, tag = 'output window, operand 0']
    %8 = vsyncpa [#allocation3], 0
    %s9 = scalar_lea.sflag [#allocation3], 1
    %10 = vsyncpa %s9, 0
    %11 = vsyncpa [#allocation4], 0
    %s12 = scalar_lea.sflag [#allocation4], 1
    %13 = vsyncpa %s12, 0
    loop: start=0, step=1, limit=4
    $region2: #{tpu_custom_call.1} parent=1 // loop_pre_header
      _
    $region3: #{tpu_custom_call.1} parent=1 // loop_header
      %s15 = sphi 0, %s19
      %p16 = scmp.ge.s32.totalorder %s15, 4
      %s22 = sphi 0, %s34
      %s23 = sphi 0, %s30
      %s24 = sphi 0, %s22
      %s25 = sphi 0, %s23
      %s26 = sphi 0, %s24
      %s27 = sphi 0, %s25
      %s35 = sphi 0, %s35
      %s37 = sphi 0, %s35
      %s38 = sphi 0, %s37
      %s52 = sphi 0, %s38
      %s56 = sphi 0, %s56
      %s58 = sphi 0, %s56
      %s59 = sphi 0, %s58
      %s73 = sphi 0, %s59
      %s81 = sphi 0, %s83
      %s84 = sphi 0, %s81
      %s85 = sphi 0, %s84
      %s101 = sphi 0, %s85
      %s109 = sphi 0, %s111
      %s112 = sphi 0, %s109
      %s113 = sphi 0, %s112
      %s129 = sphi 0, %s113
    $region4: #{tpu_custom_call.1} parent=1 // loop_header_branch
      %18 = sbr.rel (%p16) target = $region8
    $region5: #{tpu_custom_call.1} parent=1 // loop_body
      %s20 = ssub.s32 %s15, 1
      %s21 = ssub.s32 %s15, 2
      %s28 = sadd.s32 1, %s23
      %p29 = scmp.ge.s32.totalorder %s28, 1
      %s30 = scalar_select %p29, 0, %s28
      %s31 = sadd.s32 1, %s22
      %s32 = scalar_select %p29, %s31, %s22
      %p33 = scmp.ge.s32.totalorder %s32, 2
      %s34 = scalar_select %p33, 0, %s32
      %s36 = sadd.s32 %s35, 1
      %p39 = scmp.eq.s32.totalorder %s15, 1
      %p40 = scmp.ne.s32.totalorder %s35, %s37
      %p41 = scmp.eq.s32.totalorder %s15, 0
      %p42 = por %p40, %p41
      %p43 = scmp.ne.s32.totalorder %s35, %s37
      %p44 = scmp.eq.s32.totalorder %s20, 1
      %p45 = por %p43, %p44
      %p46 = scmp.ne.s32.totalorder %s37, %s38
      %p47 = scmp.eq.s32.totalorder %s20, 0
      %p48 = por %p46, %p47
      %p49 = scmp.ne.s32.totalorder %s37, %s38
      %p50 = scmp.eq.s32.totalorder %s21, 1
      %p51 = por %p49, %p50
      %p53 = scmp.ne.s32.totalorder %s38, %s52
      %p54 = scmp.eq.s32.totalorder %s21, 0
      %p55 = por %p53, %p54
      %s57 = sadd.s32 %s56, 1
      %p60 = scmp.eq.s32.totalorder %s15, 1
      %p61 = scmp.ne.s32.totalorder %s56, %s58
      %p62 = scmp.eq.s32.totalorder %s15, 0
      %p63 = por %p61, %p62
      %p64 = scmp.ne.s32.totalorder %s56, %s58
      %p65 = scmp.eq.s32.totalorder %s20, 1
      %p66 = por %p64, %p65
      %p67 = scmp.ne.s32.totalorder %s58, %s59
      %p68 = scmp.eq.s32.totalorder %s20, 0
      %p69 = por %p67, %p68
      %p70 = scmp.ne.s32.totalorder %s58, %s59
      %p71 = scmp.eq.s32.totalorder %s21, 1
      %p72 = por %p70, %p71
      %p74 = scmp.ne.s32.totalorder %s59, %s73
      %p75 = scmp.eq.s32.totalorder %s21, 0
      %p76 = por %p74, %p75
      %s77 = ssub.s32 %s22, %s34
      %s78 = ssub.s32 %s23, %s30
      %s79 = sor.u32 %s77, %s78
      %p80 = scmp.eq.s32.totalorder %s79, 0
      %s82 = sadd.s32 %s81, 1
      %s83 = scalar_select %p80, %s81, %s82
      %p86 = pneg %p80
      %p87 = scmp.eq.s32.totalorder %s15, 1
      %p88 = por %p86, %p87
      %p89 = scmp.ne.s32.totalorder %s81, %s84
      %p90 = scmp.eq.s32.totalorder %s15, 0
      %p91 = por %p89, %p90
      %p92 = scmp.ne.s32.totalorder %s81, %s84
      %p93 = scmp.eq.s32.totalorder %s20, 1
      %p94 = por %p92, %p93
      %p95 = scmp.ne.s32.totalorder %s84, %s85
      %p96 = scmp.eq.s32.totalorder %s20, 0
      %p97 = por %p95, %p96
      %p98 = scmp.ne.s32.totalorder %s84, %s85
      %p99 = scmp.eq.s32.totalorder %s21, 1
      %p100 = por %p98, %p99
      %p102 = scmp.ne.s32.totalorder %s85, %s101
      %p103 = scmp.eq.s32.totalorder %s21, 0
      %p104 = por %p102, %p103
      %s105 = ssub.s32 %s22, %s34
      %s106 = ssub.s32 %s23, %s30
      %s107 = sor.u32 %s105, %s106
      %p108 = scmp.eq.s32.totalorder %s107, 0
      %s110 = sadd.s32 %s109, 1
      %s111 = scalar_select %p108, %s109, %s110
      %p114 = pneg %p108
      %p115 = scmp.eq.s32.totalorder %s15, 1
      %p116 = por %p114, %p115
      %p117 = scmp.ne.s32.totalorder %s109, %s112
      %p118 = scmp.eq.s32.totalorder %s15, 0
      %p119 = por %p117, %p118
      %p120 = scmp.ne.s32.totalorder %s109, %s112
      %p121 = scmp.eq.s32.totalorder %s20, 1
      %p122 = por %p120, %p121
      %p123 = scmp.ne.s32.totalorder %s112, %s113
      %p124 = scmp.eq.s32.totalorder %s20, 0
      %p125 = por %p123, %p124
      %p126 = scmp.ne.s32.totalorder %s112, %s113
      %p127 = scmp.eq.s32.totalorder %s21, 1
      %p128 = por %p126, %p127
      %p130 = scmp.ne.s32.totalorder %s113, %s129
      %p131 = scmp.eq.s32.totalorder %s21, 0
      %p132 = por %p130, %p131
      %p133 = scmp.le.s32.totalorder 1, %s15
      %p134 = scmp.lt.s32.totalorder %s15, 3
      %p135 = pnand %p133, %p134
      %p136 = pneg %p135
      // Predicated region
      $region9: #{tpu_custom_call.1} parent=5 // pred_check
        _
      $region10: #{tpu_custom_call.1} parent=5 // pred_check_branch
        %138 = sbr.rel (%p135) target = $region12
      $region11: #{tpu_custom_call.1} parent=5 // pred_region
        %s139 = ssub.s32 %s15, 1
        // Predicated region
        $region13: #{tpu_custom_call.1} parent=11 // pred_check
          %p140 = pneg %p48
        $region14: #{tpu_custom_call.1} parent=11 // pred_check_branch
          %142 = sbr.rel (%p140) target = $region16
        $region15: #{tpu_custom_call.1} parent=11 // pred_region
          _
        $region16: #{tpu_custom_call.1} parent=11 // pred_fallthru
          _
        // Predicated region
        $region17: #{tpu_custom_call.1} parent=11 // pred_check
          %p143 = pneg %p69
        $region18: #{tpu_custom_call.1} parent=11 // pred_check_branch
          %145 = sbr.rel (%p143) target = $region20
        $region19: #{tpu_custom_call.1} parent=11 // pred_region
          _
        $region20: #{tpu_custom_call.1} parent=11 // pred_fallthru
          _
      $region12: #{tpu_custom_call.1} parent=5 // pred_fallthru
        _
      %p146 = scmp.lt.s32.totalorder %s15, 2
      // Predicated region
      $region21: #{tpu_custom_call.1} parent=5 // pred_check
        %p147 = pneg %p146
      $region22: #{tpu_custom_call.1} parent=5 // pred_check_branch
        %149 = sbr.rel (%p147) target = $region24
      $region23: #{tpu_custom_call.1} parent=5 // pred_region
        // Predicated region
        $region25: #{tpu_custom_call.1} parent=23 // pred_check
          %p150 = pneg %p91
        $region26: #{tpu_custom_call.1} parent=23 // pred_check_branch
          %152 = sbr.rel (%p150) target = $region28
        $region27: #{tpu_custom_call.1} parent=23 // pred_region
          %s153 = sand.u32 %s81, 1
          %s154 = scalar_lea.sflag [#allocation3], %s153
          %s155 = sand.u32 %s81, 1
          %s156 = smul.addr %s155, 16
          %s157 = scalar_lea.vmem [#allocation2], %s156
          %s158 = smul.u32 2, %s23
          %160 = vsyncadd %s154, 0
          %s161 = smul.addr %s22, 2
          %s162 = sadd.s32 %s158, %s161
          %s163 = smul.addr %s162, 8
          %s164 = scalar_lea.hbm %s2, %s163
          %s166 = sshll.u32 %s164, 4
          %s167 = int_to_ptr.hbm [resolvable:$true] %s166
          %s168 = sshll.u32 %s157, 4
          %s169 = int_to_ptr.vmem [resolvable:$true] %s168
          %171 = dma.hbm_to_vmem [thread:$0]  %s167, 256, %s169, %s154
        $region28: #{tpu_custom_call.1} parent=23 // pred_fallthru
          _
      $region24: #{tpu_custom_call.1} parent=5 // pred_fallthru
        _
      %p172 = scmp.le.s32.totalorder 1, %s15
      %p173 = scmp.lt.s32.totalorder %s15, 3
      %p174 = pnand %p172, %p173
      %p175 = pneg %p174
      // Predicated region
      $region29: #{tpu_custom_call.1} parent=5 // pred_check
        _
      $region30: #{tpu_custom_call.1} parent=5 // pred_check_branch
        %177 = sbr.rel (%p174) target = $region32
      $region31: #{tpu_custom_call.1} parent=5 // pred_region
        %s178 = ssub.s32 %s15, 1
        %s179 = sand.u32 %s84, 1
        %s180 = scalar_lea.sflag [#allocation3], %s179
        %s181 = sand.u32 %s84, 1
        %s182 = smul.addr %s181, 16
        %s183 = scalar_lea.vmem [#allocation2], %s182
        // Predicated region
        $region33: #{tpu_custom_call.1} parent=31 // pred_check
          %p184 = pneg %p97
        $region34: #{tpu_custom_call.1} parent=31 // pred_check_branch
          %186 = sbr.rel (%p184) target = $region36
        $region35: #{tpu_custom_call.1} parent=31 // pred_region
          %188 = dma.done %s180, 256
        $region36: #{tpu_custom_call.1} parent=31 // pred_fallthru
          _
        %p189 = pneg %p48
        %p190 = pneg %p45
        %p191 = pneg %p69
        %p192 = pneg %p66
        %s193 = sand.u32 %s84, 1
        %s194 = scalar_lea.sflag [#allocation3], %s193
        %s195 = sand.u32 %s84, 1
        %s196 = smul.addr %s195, 16
        %s197 = scalar_lea.vmem [#allocation2], %s196
        %p198 = pneg %p97
        %p199 = pneg %p94
        %p200 = pneg %p125
        %p201 = pneg %p122
        %s202 = sand.u32 %s112, 1
        %s203 = scalar_lea.sflag [#allocation4], %s202
        %s204 = sand.u32 %s112, 1
        %s205 = smul.addr %s204, 16
        %s206 = scalar_lea.vmem [#allocation5], %s205
        %s207 = smul.u32 2, %s25
        %s208 = smul.u32 2, %s25
        %v209 = vld [vmem:[%s0] sm:$0xff]
        %v210 = vld [vmem:[%s1] sm:$0xff]
        %v211 = vld [vmem:[%s183] sm:$0xff]
        %v212 = vld [vmem:[%s183 + $0x8] sm:$0xff]
        %214 = vset.pattern.permute.xlu0 0
        %215 = vperm.xlu0 %214, %v210
        %v216 = vpop.permute.xlu0 %215
        %vm218 = vcmask 64512
        %v220 = vsel %vm218, %v209, 0
        %222 = vmatpush.msra.mxu0 0.0
        %223 = vmatpush.msra.mxu0 0.0
        %224 = vmatpush.msra.mxu0 0.0
        %225 = vmatpush.msra.mxu0 0.0
        %226 = vmatpush.msra.mxu0 0.0
        %227 = vmatpush.msra.mxu0 0.0
        %228 = vmatpush.msra.mxu0 0.0
        %229 = vmatpush.msra.mxu0 0.0
        %230 = vmatpush.msra.mxu0 0.0
        %231 = vmatpush.msra.mxu0 0.0
        %232 = vmatpush.msra.mxu0 0.0
        %233 = vmatpush.msra.mxu0 0.0
        %234 = vmatpush.msra.mxu0 0.0
        %235 = vmatpush.msra.mxu0 0.0
        %236 = vmatpush.msra.mxu0 0.0
        %v237 = vand.u32 %v211, 4294901760
        %238 = vmatpush.msra.mxu0 %v237
        %v239 = vand.u32 %v220, 4294901760
        %v240 = vsub.f32 %v220, %v239
        %v241 = vand.u32 %v240, 4294901760
        %v242 = vsub.f32 %v240, %v241
        %v243 = vand.u32 %v242, 4294901760
        %244 = vmatmul.f32.gmra.mxu0 %v243
        %v245 = vpop.f32.mrf.mxu0
        %v246 = vadd.f32 %v216, %v245
        %247 = vdwg.mxu0
        %248 = vmatpush.msra.mxu0 0.0
        %249 = vmatpush.msra.mxu0 0.0
        %250 = vmatpush.msra.mxu0 0.0
        %251 = vmatpush.msra.mxu0 0.0
        %252 = vmatpush.msra.mxu0 0.0
        %253 = vmatpush.msra.mxu0 0.0
        %254 = vmatpush.msra.mxu0 0.0
        %255 = vmatpush.msra.mxu0 0.0
        %256 = vmatpush.msra.mxu0 0.0
        %257 = vmatpush.msra.mxu0 0.0
        %258 = vmatpush.msra.mxu0 0.0
        %259 = vmatpush.msra.mxu0 0.0
        %260 = vmatpush.msra.mxu0 0.0
        %261 = vmatpush.msra.mxu0 0.0
        %262 = vmatpush.msra.mxu0 0.0
        %v263 = vand.u32 %v211, 4294901760
        %v264 = vsub.f32 %v211, %v263
        %v265 = vand.u32 %v264, 4294901760
        %v266 = vsub.f32 %v264, %v265
        %v267 = vand.u32 %v266, 4294901760
        %268 = vmatpush.msra.mxu0 %v267
        %v269 = vand.u32 %v220, 4294901760
        %270 = vmatmul.f32.gmra.mxu0 %v269
        %v271 = vpop.f32.mrf.mxu0
        %v272 = vadd.f32 %v246, %v271
        %273 = vdwg.mxu0
        %274 = vmatpush.msra.mxu0 0.0
        %275 = vmatpush.msra.mxu0 0.0
        %276 = vmatpush.msra.mxu0 0.0
        %277 = vmatpush.msra.mxu0 0.0
        %278 = vmatpush.msra.mxu0 0.0
        %279 = vmatpush.msra.mxu0 0.0
        %280 = vmatpush.msra.mxu0 0.0
        %281 = vmatpush.msra.mxu0 0.0
        %282 = vmatpush.msra.mxu0 0.0
        %283 = vmatpush.msra.mxu0 0.0
        %284 = vmatpush.msra.mxu0 0.0
        %285 = vmatpush.msra.mxu0 0.0
        %286 = vmatpush.msra.mxu0 0.0
        %287 = vmatpush.msra.mxu0 0.0
        %288 = vmatpush.msra.mxu0 0.0
        %v289 = vand.u32 %v211, 4294901760
        %v290 = vsub.f32 %v211, %v289
        %291 = vmatpush.msra.mxu0 %v290
        %v292 = vand.u32 %v220, 4294901760
        %v293 = vsub.f32 %v220, %v292
        %294 = vmatmul.f32.gmra.mxu0 %v293
        %v295 = vpop.f32.mrf.mxu0
        %v296 = vadd.f32 %v272, %v295
        %297 = vdwg.mxu0
        %298 = vmatpush.msra.mxu0 0.0
        %299 = vmatpush.msra.mxu0 0.0
        %300 = vmatpush.msra.mxu0 0.0
        %301 = vmatpush.msra.mxu0 0.0
        %302 = vmatpush.msra.mxu0 0.0
        %303 = vmatpush.msra.mxu0 0.0
        %304 = vmatpush.msra.mxu0 0.0
        %305 = vmatpush.msra.mxu0 0.0
        %306 = vmatpush.msra.mxu0 0.0
        %307 = vmatpush.msra.mxu0 0.0
        %308 = vmatpush.msra.mxu0 0.0
        %309 = vmatpush.msra.mxu0 0.0
        %310 = vmatpush.msra.mxu0 0.0
        %311 = vmatpush.msra.mxu0 0.0
        %312 = vmatpush.msra.mxu0 0.0
        %v313 = vand.u32 %v211, 4294901760
        %314 = vmatpush.msra.mxu0 %v313
        %v315 = vand.u32 %v220, 4294901760
        %v316 = vsub.f32 %v220, %v315
        %v317 = vand.u32 %v316, 4294901760
        %318 = vmatmul.f32.gmra.mxu0 %v317
        %v319 = vpop.f32.mrf.mxu0
        %v320 = vadd.f32 %v296, %v319
        %321 = vdwg.mxu0
        %322 = vmatpush.msra.mxu0 0.0
        %323 = vmatpush.msra.mxu0 0.0
        %324 = vmatpush.msra.mxu0 0.0
        %325 = vmatpush.msra.mxu0 0.0
        %326 = vmatpush.msra.mxu0 0.0
        %327 = vmatpush.msra.mxu0 0.0
        %328 = vmatpush.msra.mxu0 0.0
        %329 = vmatpush.msra.mxu0 0.0
        %330 = vmatpush.msra.mxu0 0.0
        %331 = vmatpush.msra.mxu0 0.0
        %332 = vmatpush.msra.mxu0 0.0
        %333 = vmatpush.msra.mxu0 0.0
        %334 = vmatpush.msra.mxu0 0.0
        %335 = vmatpush.msra.mxu0 0.0
        %336 = vmatpush.msra.mxu0 0.0
        %v337 = vand.u32 %v211, 4294901760
        %v338 = vsub.f32 %v211, %v337
        %v339 = vand.u32 %v338, 4294901760
        %340 = vmatpush.msra.mxu0 %v339
        %v341 = vand.u32 %v220, 4294901760
        %342 = vmatmul.f32.gmra.mxu0 %v341
        %v343 = vpop.f32.mrf.mxu0
        %v344 = vadd.f32 %v320, %v343
        %345 = vdwg.mxu0
        %346 = vmatpush.msra.mxu0 0.0
        %347 = vmatpush.msra.mxu0 0.0
        %348 = vmatpush.msra.mxu0 0.0
        %349 = vmatpush.msra.mxu0 0.0
        %350 = vmatpush.msra.mxu0 0.0
        %351 = vmatpush.msra.mxu0 0.0
        %352 = vmatpush.msra.mxu0 0.0
        %353 = vmatpush.msra.mxu0 0.0
        %354 = vmatpush.msra.mxu0 0.0
        %355 = vmatpush.msra.mxu0 0.0
        %356 = vmatpush.msra.mxu0 0.0
        %357 = vmatpush.msra.mxu0 0.0
        %358 = vmatpush.msra.mxu0 0.0
        %359 = vmatpush.msra.mxu0 0.0
        %360 = vmatpush.msra.mxu0 0.0
        %v361 = vand.u32 %v211, 4294901760
        %362 = vmatpush.msra.mxu0 %v361
        %v363 = vand.u32 %v220, 4294901760
        %364 = vmatmul.f32.gmra.mxu0 %v363
        %v365 = vpop.f32.mrf.mxu0
        %v366 = vadd.f32 %v344, %v365
        %367 = vdwg.mxu0
        %368 = vmatpush.msra.mxu0 0.0
        %369 = vmatpush.msra.mxu0 0.0
        %370 = vmatpush.msra.mxu0 0.0
        %371 = vmatpush.msra.mxu0 0.0
        %372 = vmatpush.msra.mxu0 0.0
        %373 = vmatpush.msra.mxu0 0.0
        %374 = vmatpush.msra.mxu0 0.0
        %375 = vmatpush.msra.mxu0 0.0
        %376 = vmatpush.msra.mxu0 0.0
        %377 = vmatpush.msra.mxu0 0.0
        %378 = vmatpush.msra.mxu0 0.0
        %379 = vmatpush.msra.mxu0 0.0
        %380 = vmatpush.msra.mxu0 0.0
        %381 = vmatpush.msra.mxu0 0.0
        %382 = vmatpush.msra.mxu0 0.0
        %v383 = vand.u32 %v212, 4294901760
        %384 = vmatpush.msra.mxu0 %v383
        %v385 = vand.u32 %v220, 4294901760
        %v386 = vsub.f32 %v220, %v385
        %v387 = vand.u32 %v386, 4294901760
        %v388 = vsub.f32 %v386, %v387
        %v389 = vand.u32 %v388, 4294901760
        %390 = vmatmul.f32.gmra.mxu0 %v389
        %v391 = vpop.f32.mrf.mxu0
        %v392 = vadd.f32 %v216, %v391
        %393 = vdwg.mxu0
        %394 = vmatpush.msra.mxu0 0.0
        %395 = vmatpush.msra.mxu0 0.0
        %396 = vmatpush.msra.mxu0 0.0
        %397 = vmatpush.msra.mxu0 0.0
        %398 = vmatpush.msra.mxu0 0.0
        %399 = vmatpush.msra.mxu0 0.0
        %400 = vmatpush.msra.mxu0 0.0
        %401 = vmatpush.msra.mxu0 0.0
        %402 = vmatpush.msra.mxu0 0.0
        %403 = vmatpush.msra.mxu0 0.0
        %404 = vmatpush.msra.mxu0 0.0
        %405 = vmatpush.msra.mxu0 0.0
        %406 = vmatpush.msra.mxu0 0.0
        %407 = vmatpush.msra.mxu0 0.0
        %408 = vmatpush.msra.mxu0 0.0
        %v409 = vand.u32 %v212, 4294901760
        %v410 = vsub.f32 %v212, %v409
        %v411 = vand.u32 %v410, 4294901760
        %v412 = vsub.f32 %v410, %v411
        %v413 = vand.u32 %v412, 4294901760
        %414 = vmatpush.msra.mxu0 %v413
        %v415 = vand.u32 %v220, 4294901760
        %416 = vmatmul.f32.gmra.mxu0 %v415
        %v417 = vpop.f32.mrf.mxu0
        %v418 = vadd.f32 %v392, %v417
        %419 = vdwg.mxu0
        %420 = vmatpush.msra.mxu0 0.0
        %421 = vmatpush.msra.mxu0 0.0
        %422 = vmatpush.msra.mxu0 0.0
        %423 = vmatpush.msra.mxu0 0.0
        %424 = vmatpush.msra.mxu0 0.0
        %425 = vmatpush.msra.mxu0 0.0
        %426 = vmatpush.msra.mxu0 0.0
        %427 = vmatpush.msra.mxu0 0.0
        %428 = vmatpush.msra.mxu0 0.0
        %429 = vmatpush.msra.mxu0 0.0
        %430 = vmatpush.msra.mxu0 0.0
        %431 = vmatpush.msra.mxu0 0.0
        %432 = vmatpush.msra.mxu0 0.0
        %433 = vmatpush.msra.mxu0 0.0
        %434 = vmatpush.msra.mxu0 0.0
        %v435 = vand.u32 %v212, 4294901760
        %v436 = vsub.f32 %v212, %v435
        %437 = vmatpush.msra.mxu0 %v436
        %v438 = vand.u32 %v220, 4294901760
        %v439 = vsub.f32 %v220, %v438
        %440 = vmatmul.f32.gmra.mxu0 %v439
        %v441 = vpop.f32.mrf.mxu0
        %v442 = vadd.f32 %v418, %v441
        %443 = vdwg.mxu0
        %444 = vmatpush.msra.mxu0 0.0
        %445 = vmatpush.msra.mxu0 0.0
        %446 = vmatpush.msra.mxu0 0.0
        %447 = vmatpush.msra.mxu0 0.0
        %448 = vmatpush.msra.mxu0 0.0
        %449 = vmatpush.msra.mxu0 0.0
        %450 = vmatpush.msra.mxu0 0.0
        %451 = vmatpush.msra.mxu0 0.0
        %452 = vmatpush.msra.mxu0 0.0
        %453 = vmatpush.msra.mxu0 0.0
        %454 = vmatpush.msra.mxu0 0.0
        %455 = vmatpush.msra.mxu0 0.0
        %456 = vmatpush.msra.mxu0 0.0
        %457 = vmatpush.msra.mxu0 0.0
        %458 = vmatpush.msra.mxu0 0.0
        %v459 = vand.u32 %v212, 4294901760
        %460 = vmatpush.msra.mxu0 %v459
        %v461 = vand.u32 %v220, 4294901760
        %v462 = vsub.f32 %v220, %v461
        %v463 = vand.u32 %v462, 4294901760
        %464 = vmatmul.f32.gmra.mxu0 %v463
        %v465 = vpop.f32.mrf.mxu0
        %v466 = vadd.f32 %v442, %v465
        %467 = vdwg.mxu0
        %468 = vmatpush.msra.mxu0 0.0
        %469 = vmatpush.msra.mxu0 0.0
        %470 = vmatpush.msra.mxu0 0.0
        %471 = vmatpush.msra.mxu0 0.0
        %472 = vmatpush.msra.mxu0 0.0
        %473 = vmatpush.msra.mxu0 0.0
        %474 = vmatpush.msra.mxu0 0.0
        %475 = vmatpush.msra.mxu0 0.0
        %476 = vmatpush.msra.mxu0 0.0
        %477 = vmatpush.msra.mxu0 0.0
        %478 = vmatpush.msra.mxu0 0.0
        %479 = vmatpush.msra.mxu0 0.0
        %480 = vmatpush.msra.mxu0 0.0
        %481 = vmatpush.msra.mxu0 0.0
        %482 = vmatpush.msra.mxu0 0.0
        %v483 = vand.u32 %v212, 4294901760
        %v484 = vsub.f32 %v212, %v483
        %v485 = vand.u32 %v484, 4294901760
        %486 = vmatpush.msra.mxu0 %v485
        %v487 = vand.u32 %v220, 4294901760
        %488 = vmatmul.f32.gmra.mxu0 %v487
        %v489 = vpop.f32.mrf.mxu0
        %v490 = vadd.f32 %v466, %v489
        %491 = vdwg.mxu0
        %492 = vmatpush.msra.mxu0 0.0
        %493 = vmatpush.msra.mxu0 0.0
        %494 = vmatpush.msra.mxu0 0.0
        %495 = vmatpush.msra.mxu0 0.0
        %496 = vmatpush.msra.mxu0 0.0
        %497 = vmatpush.msra.mxu0 0.0
        %498 = vmatpush.msra.mxu0 0.0
        %499 = vmatpush.msra.mxu0 0.0
        %500 = vmatpush.msra.mxu0 0.0
        %501 = vmatpush.msra.mxu0 0.0
        %502 = vmatpush.msra.mxu0 0.0
        %503 = vmatpush.msra.mxu0 0.0
        %504 = vmatpush.msra.mxu0 0.0
        %505 = vmatpush.msra.mxu0 0.0
        %506 = vmatpush.msra.mxu0 0.0
        %v507 = vand.u32 %v212, 4294901760
        %508 = vmatpush.msra.mxu0 %v507
        %v509 = vand.u32 %v220, 4294901760
        %510 = vmatmul.f32.gmra.mxu0 %v509
        %v511 = vpop.f32.mrf.mxu0
        %v512 = vadd.f32 %v490, %v511
        %513 = vdwg.mxu0
        %v514 = vmax.f32 %v366, 0.0
        %v515 = vmax.f32 %v512, 0.0
        %516 = vst [vmem:[%s206] sm:$0xff] %v514
        %517 = vst [vmem:[%s206 + $0x8] sm:$0xff] %v515
        %s518 = sand.u32 %s112, 1
        %s519 = scalar_lea.sflag [#allocation4], %s518
        %s520 = sand.u32 %s112, 1
        %s521 = smul.addr %s520, 16
        %s522 = scalar_lea.vmem [#allocation5], %s521
        // Predicated region
        $region37: #{tpu_custom_call.1} parent=31 // pred_check
          %p523 = pneg %p122
        $region38: #{tpu_custom_call.1} parent=31 // pred_check_branch
          %525 = sbr.rel (%p523) target = $region40
        $region39: #{tpu_custom_call.1} parent=31 // pred_region
          %s526 = smul.u32 2, %s25
          %528 = vsyncadd %s519, 0
          %s529 = smul.addr %s24, 2
          %s530 = sadd.s32 %s526, %s529
          %s531 = smul.addr %s530, 8
          %s532 = scalar_lea.hbm %s3, %s531
          %s534 = sshll.u32 %s522, 4
          %s535 = int_to_ptr.vmem [resolvable:$true] %s534
          %s536 = sshll.u32 %s532, 4
          %s537 = int_to_ptr.hbm [resolvable:$true] %s536
          %539 = dma.vmem_to_hbm [thread:$0]  %s535, 256, %s537, %s519
        $region40: #{tpu_custom_call.1} parent=31 // pred_fallthru
          _
      $region32: #{tpu_custom_call.1} parent=5 // pred_fallthru
        _
      %p540 = scmp.le.s32.totalorder 2, %s15
      // Predicated region
      $region41: #{tpu_custom_call.1} parent=5 // pred_check
        %p541 = pneg %p540
      $region42: #{tpu_custom_call.1} parent=5 // pred_check_branch
        %543 = sbr.rel (%p541) target = $region44
      $region43: #{tpu_custom_call.1} parent=5 // pred_region
        %s544 = ssub.s32 %s15, 2
        // Predicated region
        $region45: #{tpu_custom_call.1} parent=43 // pred_check
          %p545 = pneg %p128
        $region46: #{tpu_custom_call.1} parent=43 // pred_check_branch
          %547 = sbr.rel (%p545) target = $region48
        $region47: #{tpu_custom_call.1} parent=43 // pred_region
          %s548 = sand.u32 %s113, 1
          %s549 = scalar_lea.sflag [#allocation4], %s548
          %s550 = sand.u32 %s113, 1
          %s551 = smul.addr %s550, 16
          %s552 = scalar_lea.vmem [#allocation5], %s551
          %554 = dma.done %s549, 256
        $region48: #{tpu_custom_call.1} parent=43 // pred_fallthru
          _
      $region44: #{tpu_custom_call.1} parent=5 // pred_fallthru
        _
    $region6: #{tpu_custom_call.1} parent=1 // loop_footer
      %s19 = sadd.s32 1, %s15
    $region7: #{tpu_custom_call.1} parent=1 // loop_footer_branch
      %14 = sbr.rel target = $region3
    $region8: #{tpu_custom_call.1} parent=1 // loop_exit
      _
    %555 = vsyncpa [#allocation3], 1
    %s556 = scalar_lea.sflag [#allocation3], 1
    %557 = vsyncpa %s556, 1
    %558 = vsyncpa [#allocation4], 1
    %s559 = scalar_lea.sflag [#allocation4], 1
    %560 = vsyncpa %s559, 1

</llo_original>
